<compile_context>
chip_gen: v5e
topology: v5e:2x2
jax: 0.10.0
libtpu: 0.0.40
codegen_flags: <defaults>
</compile_context>

<pallas_src>
import functools

import jax
import jax.numpy as jnp
import numpy as np
from jax.experimental import pallas as pl
from jax.experimental.pallas import tpu as pltpu


# ----------------------------- Pallas kernels ------------------------------

def _mm_bias_act_kernel(a_ref, w_ref, b_ref, o_ref, *, relu):
    acc = jnp.dot(a_ref[...], w_ref[...], preferred_element_type=jnp.float32)
    acc = acc + b_ref[...]
    if relu:
        acc = jnp.maximum(acc, 0.0)
    o_ref[...] = acc.astype(o_ref.dtype)


def _pick_tm(mp, *, tm_max=1024, min_steps=4):
    """M-tile: multiple of 8, >= min_steps grid steps (v7x has 2 TCs and
    shards the 'parallel' axis), capped so double-buffered blocks stay far
    below even v7x's 32 MiB scoped VMEM while still amortizing the ~0.35us
    per-grid-step overhead on large-M layers (v5e/v6e)."""
    tm = 8 * pl.cdiv(mp, 8 * min_steps)
    return max(8, min(tm, tm_max))


def matmul_bias_act(a, w_mat, b, *, relu=False, out_dtype=jnp.bfloat16):
    """(M,Kc) @ (Kc,N) + b (+ReLU). bf16 operands, f32 MXU accumulation,
    out_dtype storage (bf16 for intermediate activations).

    No padded copies: K/N block dims use the full (native) array dims, and the
    M grid is ragged (pl.cdiv) so garbage rows of the last partial tile are
    simply never written back.
    """
    M, Kc = a.shape
    N = w_mat.shape[1]
    Mp = M
    if M < 8:                                   # degenerate tiny-M guard
        Mp = 8
        a = jnp.pad(a, ((0, Mp - M), (0, 0)))
    tm = _pick_tm(Mp)
    out = pl.pallas_call(
        functools.partial(_mm_bias_act_kernel, relu=relu),
        out_shape=jax.ShapeDtypeStruct((Mp, N), out_dtype),
        grid=(pl.cdiv(Mp, tm),),
        in_specs=[
            pl.BlockSpec((tm, Kc), lambda i: (i, 0)),
            pl.BlockSpec((Kc, N), lambda i: (0, 0)),
            pl.BlockSpec((1, N), lambda i: (0, 0)),
        ],
        out_specs=pl.BlockSpec((tm, N), lambda i: (i, 0)),
        compiler_params=pltpu.CompilerParams(
            dimension_semantics=("parallel",)),
    )(a.astype(jnp.bfloat16), w_mat.astype(jnp.bfloat16),
      b.reshape(1, N).astype(jnp.float32))
    return out if Mp == M else out[:M]


def _latent_kernel(a_ref, w_ref, b_ref, eps_ref, mean_ref, logvar_ref, z_ref,
                   *, n):
    # One 128-wide MXU pass for both heads; slice the 64/64 columns in-kernel.
    acc = jnp.dot(a_ref[...], w_ref[...],
                  preferred_element_type=jnp.float32) + b_ref[...]
    mean = acc[:, :n]
    logv = acc[:, n:]
    mean_ref[...] = mean
    logvar_ref[...] = logv
    eps = eps_ref[...].astype(jnp.float32)
    z_ref[...] = (mean + jnp.exp(0.5 * logv) * eps).astype(z_ref.dtype)


def latent_heads(x, wm, wv, bm, bv, eps_rows):
    """Fused conv_mean + conv_log_var + reparameterization.

    x: NHWC activation; wm/wv: (Cout, Cin, K, K) Conv2d weights (K=5, s=2).
    Both heads share one im2col read and one concatenated (Kc, 128) weight.
    """
    K, stride = wm.shape[2], 2
    a, (B, Ho, Wo) = _im2col_nhwc(x.astype(jnp.bfloat16), K, stride)
    Kc = a.shape[1]
    N = wm.shape[0]
    wm_mat = wm.transpose(2, 3, 1, 0).reshape(Kc, N)
    wv_mat = wv.transpose(2, 3, 1, 0).reshape(Kc, N)
    w_cat = jnp.concatenate([wm_mat, wv_mat], axis=1).astype(jnp.bfloat16)
    b_cat = jnp.concatenate([bm, bv]).reshape(1, 2 * N).astype(jnp.float32)

    M = a.shape[0]
    Mp = M
    if M < 8:
        Mp = 8
        a = jnp.pad(a, ((0, Mp - M), (0, 0)))
        eps_rows = jnp.pad(eps_rows, ((0, Mp - M), (0, 0)))
    tm = _pick_tm(Mp)

    mean, logv, z = pl.pallas_call(
        functools.partial(_latent_kernel, n=N),
        out_shape=[jax.ShapeDtypeStruct((Mp, N), jnp.float32),   # mean (external)
                   jax.ShapeDtypeStruct((Mp, N), jnp.float32),   # log_var (external)
                   jax.ShapeDtypeStruct((Mp, N), jnp.bfloat16)], # z (feeds decoder)
        grid=(pl.cdiv(Mp, tm),),
        in_specs=[
            pl.BlockSpec((tm, Kc), lambda i: (i, 0)),
            pl.BlockSpec((Kc, 2 * N), lambda i: (0, 0)),
            pl.BlockSpec((1, 2 * N), lambda i: (0, 0)),
            pl.BlockSpec((tm, N), lambda i: (i, 0)),
        ],
        out_specs=[pl.BlockSpec((tm, N), lambda i: (i, 0))] * 3,
        compiler_params=pltpu.CompilerParams(
            dimension_semantics=("parallel",)),
    )(a, w_cat, b_cat, eps_rows.astype(jnp.bfloat16))

    def unflat(o):
        return (o if Mp == M else o[:M]).reshape(B, Ho, Wo, N)

    return unflat(mean), unflat(logv), unflat(z)


# --------------------------- conv layers (NHWC glue) ------------------------

def _im2col_nhwc(x, K, stride):
    """x: (B,H,W,Cin) -> (B*Ho*Wo, K*K*Cin) with column order (i, j, ci)."""
    # TODO(synk): move this gather into the Pallas kernel (phase-split input +
    # in-kernel tap loop) to remove the K^2/s^2 activation-byte blow-up.
    B, H, W, Cin = x.shape
    Ho = (H - K) // stride + 1
    Wo = (W - K) // stride + 1
    cols = []
    for i in range(K):
        for j in range(K):
            cols.append(x[:, i:i + stride * (Ho - 1) + 1:stride,
                             j:j + stride * (Wo - 1) + 1:stride, :])
    a = jnp.concatenate(cols, axis=-1)               # (B, Ho, Wo, K*K*Cin)
    return a.reshape(B * Ho * Wo, K * K * Cin), (B, Ho, Wo)


def conv2d(x, w, b, stride, *, relu=False, out_dtype=jnp.bfloat16):
    """x: NHWC; w: (Cout, Cin, K, K) [PyTorch Conv2d]; VALID, square stride."""
    Cout, Cin, K, _ = w.shape
    a, (B, Ho, Wo) = _im2col_nhwc(x.astype(jnp.bfloat16), K, stride)
    w_mat = w.transpose(2, 3, 1, 0).reshape(K * K * Cin, Cout)
    out = matmul_bias_act(a, w_mat, b, relu=relu, out_dtype=out_dtype)
    return out.reshape(B, Ho, Wo, Cout)


def _subpixel_weights(w, stride):
    """Phase weights for ConvTranspose2d as a (Km*Km*Cin, s*s*Cout) matmul.

    w: (Cin, Cout, K, K) [PyTorch ConvTranspose2d layout].
    Phase (r,t) weight tap (m',n') is w[ci, co, s*(Km-1-m')+r, s*(Km-1-n')+t]
    (zero when the index falls outside the kernel).
    Columns are ordered (r, t, co) so Cout stays the innermost (lane) dim and
    the post-matmul pixel-shuffle never crosses lanes.
    """
    Cin, Cout, K, _ = w.shape
    s = stride
    Km = -(-K // s)                                   # ceil(K/s)
    r = np.arange(s)[:, None]
    m = np.arange(Km)[None, :]
    idx = s * (Km - 1 - m) + r                        # (s, Km)
    valid = idx < K
    idx_c = np.where(valid, idx, 0)
    wg = w[:, :, idx_c, :][:, :, :, :, idx_c]         # (Cin,Cout,s,Km,s,Km)
    mask = (valid[:, :, None, None] & valid[None, None, :, :]).astype(np.float32)
    wg = wg * jnp.asarray(mask)[None, None]
    # rows (m', n', ci), cols (r, t, co)
    w_mat = wg.transpose(3, 5, 0, 2, 4, 1).reshape(Km * Km * Cin, s * s * Cout)
    return w_mat, Km


def conv_transpose2d(x, w, b, stride, *, relu=False, out_dtype=jnp.bfloat16,
                     crop_hw=None):
    """Sub-pixel (polyphase) ConvTranspose2d, no padding. x: NHWC.

    crop_hw=(h_max, w_max): only computes the patch rows/cols contributing to
    output rows < h_max and cols < w_max (for the module's final crop).
    """
    B, H, W, Cin = x.shape
    Cout, K = w.shape[1], w.shape[2]
    s = stride
    w_mat, Km = _subpixel_weights(w, s)
    Ho, Wo = (H - 1) * s + K, (W - 1) * s + K
    if crop_hw is not None:
        Ho, Wo = min(Ho, crop_hw[0]), min(Wo, crop_hw[1])
    Hp, Wp = -(-Ho // s), -(-Wo // s)                 # patch rows/cols needed
    xpad = jnp.pad(x.astype(jnp.bfloat16),
                   ((0, 0), (Km - 1, Km - 1), (Km - 1, Km - 1), (0, 0)))
    xpad = xpad[:, :Hp + Km - 1, :Wp + Km - 1, :]
    a, _ = _im2col_nhwc(xpad, Km, 1)
    out = matmul_bias_act(a, w_mat, jnp.tile(b, s * s), relu=relu,
                          out_dtype=out_dtype)
    # Pixel shuffle: cols are (r, t, co) so this only permutes outer dims
    # (sublane/row interleave); Cout stays on lanes.
    # TODO(synk): fuse this interleave into the kernel's output index_map so
    # the shuffle never round-trips through HBM.
    out = out.reshape(B, Hp, Wp, s, s, Cout)
    out = out.transpose(0, 1, 3, 2, 4, 5).reshape(B, Hp * s, Wp * s, Cout)
    return out[:, :Ho, :Wo, :]


# ------------------------------- VAE forward --------------------------------

def init_params(key):
    keys = jax.random.split(key, 14)

    def u(k, shape, fan_in):
        bound = 1.0 / float(fan_in) ** 0.5
        return jax.random.uniform(k, shape, jnp.float32, -bound, bound)

    p = {}
    # Encoder (Conv2d weights: (Cout, Cin, K, K))
    p['e1_w'] = u(keys[0], (16, 2, 10, 10), 2 * 10 * 10)
    p['e1_b'] = u(keys[1], (16,), 2 * 10 * 10)
    p['e2_w'] = u(keys[2], (32, 16, 5, 5), 16 * 5 * 5)
    p['e2_b'] = u(keys[3], (32,), 16 * 5 * 5)
    p['em_w'] = u(keys[4], (64, 32, 5, 5), 32 * 5 * 5)
    p['em_b'] = u(keys[5], (64,), 32 * 5 * 5)
    p['ev_w'] = u(keys[6], (64, 32, 5, 5), 32 * 5 * 5)
    p['ev_b'] = u(keys[7], (64,), 32 * 5 * 5)
    # Decoder (ConvTranspose2d weights: (Cin, Cout, K, K))
    p['d0_w'] = u(keys[8], (64, 32, 5, 5), 32 * 5 * 5)
    p['d0_b'] = u(keys[9], (32,), 32 * 5 * 5)
    p['d1_w'] = u(keys[10], (32, 16, 5, 5), 16 * 5 * 5)
    p['d1_b'] = u(keys[11], (16,), 16 * 5 * 5)
    p['d2_w'] = u(keys[12], (16, 2, 10, 10), 2 * 10 * 10)
    p['d2_b'] = u(keys[13], (2,), 2 * 10 * 10)
    return p


def vae_forward(params, Tmag, Tphase, eps_key):
    # Encoder (NHWC internally)
    x = jnp.stack([Tmag, Tphase], axis=-1)                       # (B,H,W,2)
    x = conv2d(x, params['e1_w'], params['e1_b'], 5, relu=True)
    x = conv2d(x, params['e2_w'], params['e2_b'], 2, relu=True)
    B, He, We, _ = x.shape
    Hm, Wm = (He - 5) // 2 + 1, (We - 5) // 2 + 1
    # Gaussian sampling (torch.randn_like) via jax.random in the wrapper; the
    # reparameterization arithmetic is fused into the latent Pallas kernel.
    eps = jax.random.normal(eps_key, (B, 64, Hm, Wm), jnp.float32)
    eps_rows = eps.transpose(0, 2, 3, 1).reshape(B * Hm * Wm, 64)
    mean, log_var, z = latent_heads(x, params['em_w'], params['ev_w'],
                                    params['em_b'], params['ev_b'], eps_rows)
    # Decoder
    y = conv_transpose2d(z, params['d0_w'], params['d0_b'], 2, relu=True)
    y = conv_transpose2d(y, params['d1_w'], params['d1_b'], 2, relu=True)
    y = conv_transpose2d(y, params['d2_w'], params['d2_b'], 6,
                         out_dtype=jnp.float32, crop_hw=(250, 257))
    Tmag_hat, Tphase_hat = y[..., 0], y[..., 1]
    return (Tmag_hat, Tphase_hat,
            mean.transpose(0, 3, 1, 2), log_var.transpose(0, 3, 1, 2))


# ----------------------------- Pure-JAX reference ---------------------------
# Same bf16-operand / f32-accumulate numerics so the comparison is tight.

def _conv2d_ref(x, w, b, stride, relu=False):
    out = jax.lax.conv_general_dilated(
        x.astype(jnp.bfloat16), w.astype(jnp.bfloat16), (stride, stride),
        'VALID', dimension_numbers=('NCHW', 'OIHW', 'NCHW'),
        preferred_element_type=jnp.float32)
    out = out + b[None, :, None, None]
    return jnp.maximum(out, 0.0) if relu else out


def _conv_transpose2d_ref(x, w, b, stride, relu=False):
    K = w.shape[2]
    w_conv = jnp.flip(w, (2, 3)).transpose(1, 0, 2, 3)
    out = jax.lax.conv_general_dilated(
        x.astype(jnp.bfloat16), w_conv.astype(jnp.bfloat16), (1, 1),
        padding=[(K - 1, K - 1), (K - 1, K - 1)],
        lhs_dilation=(stride, stride),
        dimension_numbers=('NCHW', 'OIHW', 'NCHW'),
        preferred_element_type=jnp.float32)
    out = out + b[None, :, None, None]
    return jnp.maximum(out, 0.0) if relu else out


def vae_forward_ref(params, Tmag, Tphase, eps_key):
    x = jnp.stack([Tmag, Tphase], axis=1)
    x = _conv2d_ref(x, params['e1_w'], params['e1_b'], 5, relu=True)
    x = _conv2d_ref(x, params['e2_w'], params['e2_b'], 2, relu=True)
    mean = _conv2d_ref(x, params['em_w'], params['em_b'], 2)
    log_var = _conv2d_ref(x, params['ev_w'], params['ev_b'], 2)
    eps = jax.random.normal(eps_key, mean.shape, mean.dtype)
    z = mean + jnp.exp(0.5 * log_var) * eps
    y = _conv_transpose2d_ref(z, params['d0_w'], params['d0_b'], 2, relu=True)
    y = _conv_transpose2d_ref(y, params['d1_w'], params['d1_b'], 2, relu=True)
    y = _conv_transpose2d_ref(y, params['d2_w'], params['d2_b'], 6)
    y = y[:, :, :250, :257]
    return y[:, 0, :, :], y[:, 1, :, :], mean, log_var


# ------------------------------------ main -----------------------------------

if __name__ == "__main__":
    key = jax.random.PRNGKey(0)
    k_param, k_mag, k_phase, k_eps = jax.random.split(key, 4)
    params = init_params(k_param)

    # Structured-weight sanity check of the polyphase decomposition + crop
    # path (asymmetric weights catch phase/tap swaps that random weights hide).
    xs = (jnp.arange(2 * 3 * 7 * 9, dtype=jnp.float32).reshape(2, 3, 7, 9)
          * 0.01)
    ws = (jnp.arange(3 * 4 * 10 * 10, dtype=jnp.float32).reshape(3, 4, 10, 10)
          * 0.001)
    bs = jnp.arange(4, dtype=jnp.float32) * 0.1
    mine = conv_transpose2d(xs.transpose(0, 2, 3, 1), ws, bs, 6,
                            crop_hw=(40, 50))
    refv = _conv_transpose2d_ref(xs, ws, bs, 6)[:, :, :40, :50]
    np.testing.assert_allclose(np.asarray(mine),
                               np.asarray(refv.transpose(0, 2, 3, 1)),
                               rtol=2e-2, atol=2e-2)

    # The module's natural spectrogram size (it hard-codes the 250x257 crop);
    # still only ~0.5 MB of input at batch=2.
    B, H, W = 2, 250, 257
    Tmag = jax.random.normal(k_mag, (B, H, W), jnp.float32)
    Tphase = jax.random.normal(k_phase, (B, H, W), jnp.float32)

    fwd = jax.jit(vae_forward)
    Tmag_hat, Tphase_hat, mean, log_var = fwd(params, Tmag, Tphase, k_eps)
    jax.block_until_ready((Tmag_hat, Tphase_hat, mean, log_var))

    # Sanity check against a pure-JAX (lax.conv) reference with matching
    # bf16-operand / f32-accumulate numerics.
    r_mag, r_phase, r_mean, r_logvar = jax.jit(vae_forward_ref)(
        params, Tmag, Tphase, k_eps)
    np.testing.assert_allclose(np.asarray(mean), np.asarray(r_mean),
                               rtol=1e-2, atol=1e-2)
    np.testing.assert_allclose(np.asarray(log_var), np.asarray(r_logvar),
                               rtol=1e-2, atol=1e-2)
    np.testing.assert_allclose(np.asarray(Tmag_hat), np.asarray(r_mag),
                               rtol=1e-2, atol=1e-2)
    np.testing.assert_allclose(np.asarray(Tphase_hat), np.asarray(r_phase),
                               rtol=1e-2, atol=1e-2)

    print("KERNEL_OK")
</pallas_src>

<mosaic_0001>
module attributes {stable_mosaic.version = 11 : i64} {
  func.func @_mm_bias_act_kernel(%arg0: i32, %arg1: memref<32x12xbf16, #tpu.memory_space<vmem>>, %arg2: memref<12x144xbf16, #tpu.memory_space<vmem>>, %arg3: memref<1x144xf32, #tpu.memory_space<vmem>>, %arg4: memref<32x144xbf16, #tpu.memory_space<vmem>>) attributes {dimension_semantics = [#tpu.dimension_semantics<parallel>], iteration_bounds = array<i64: 4>, scalar_prefetch = 0 : i64, scratch_operands = 0 : i64, tpu.core_type = #tpu.core_type<tc>, window_params = [{transform_indices = @transform_0, window_bounds = array<i64: 32, 12>}, {pipeline_mode = #tpu.pipeline_mode<synchronous>, transform_indices = @transform_1, window_bounds = array<i64: 12, 144>}, {pipeline_mode = #tpu.pipeline_mode<synchronous>, transform_indices = @transform_2, window_bounds = array<i64: 1, 144>}, {transform_indices = @transform_3, window_bounds = array<i64: 32, 144>}]} {
    %c0 = arith.constant 0 : index
    %c0_0 = arith.constant 0 : index
    %0 = vector.load %arg1[%c0, %c0_0] : memref<32x12xbf16, #tpu.memory_space<vmem>>, vector<32x12xbf16>
    %c0_1 = arith.constant 0 : index
    %c0_2 = arith.constant 0 : index
    %1 = vector.load %arg2[%c0_1, %c0_2] : memref<12x144xbf16, #tpu.memory_space<vmem>>, vector<12x144xbf16>
    %cst = arith.constant dense<0.000000e+00> : vector<32x144xf32>
    %2 = tpu.matmul %0, %1, %cst {dimension_numbers = #tpu.dot_dimension_numbers<[1], [0], [0], [1], [0, 0, 1, 1], [], []>} : vector<32x12xbf16>, vector<12x144xbf16>, vector<32x144xf32> -> vector<32x144xf32>
    %c0_3 = arith.constant 0 : index
    %c0_4 = arith.constant 0 : index
    %3 = vector.load %arg3[%c0_3, %c0_4] : memref<1x144xf32, #tpu.memory_space<vmem>>, vector<1x144xf32>
    %4 = vector.broadcast %3 : vector<1x144xf32> to vector<32x144xf32>
    %5 = arith.addf %2, %4 : vector<32x144xf32>
    %6 = arith.truncf %5 : vector<32x144xf32> to vector<32x144xbf16>
    %c0_5 = arith.constant 0 : index
    %c0_6 = arith.constant 0 : index
    %7 = vector.load %arg4[%c0_5, %c0_6] : memref<32x144xbf16, #tpu.memory_space<vmem>>, vector<32x144xbf16>
    tpu.vector_store %arg4[%c0_5, %c0_6], %6 {strides = array<i32>} : memref<32x144xbf16, #tpu.memory_space<vmem>>, vector<32x144xbf16>,
    return
  }
  func.func @transform_0(%arg0: i32) -> (i32, i32) {
    %c0_i32 = arith.constant 0 : i32
    %c0_i32_0 = arith.constant 0 : i32
    return %arg0, %c0_i32 : i32, i32
  }
  func.func @transform_1(%arg0: i32) -> (i32, i32) {
    %c0_i32 = arith.constant 0 : i32
    %c0_i32_0 = arith.constant 0 : i32
    %c0_i32_1 = arith.constant 0 : i32
    return %c0_i32, %c0_i32_0 : i32, i32
  }
  func.func @transform_2(%arg0: i32) -> (i32, i32) {
    %c0_i32 = arith.constant 0 : i32
    %c0_i32_0 = arith.constant 0 : i32
    %c0_i32_1 = arith.constant 0 : i32
    return %c0_i32, %c0_i32_0 : i32, i32
  }
  func.func @transform_3(%arg0: i32) -> (i32, i32) {
    %c0_i32 = arith.constant 0 : i32
    %c0_i32_0 = arith.constant 0 : i32
    return %arg0, %c0_i32 : i32, i32
  }
}

</mosaic_0001>

<llo_original>
// kernel: tpu_custom_call.1
$region0: #{tpu_custom_call.1}
  #allocation0 [shape = 'u32[]', space=smem, size = 0x4, offset = 0x4, fixed_abs, tag = 'smem constant byte address 0x4 - core index']
  #allocation1 [shape = 'u32[72,128]{1,0:T(1,128)}', space=vmem, size = 0x9000, scoped, tag = 'internal scratch']
  %s0 = inlined_call_operand.vmem [shape: bf16[126,12], index: 0, kind: input, shape index: {}]
  %s1 = inlined_call_operand.vmem [shape: bf16[12,144], index: 1, kind: input, shape index: {}]
  %s2 = inlined_call_operand.vmem [shape: f32[1,144], index: 2, kind: input, shape index: {}]
  %s3 = inlined_call_operand.vmem [shape: bf16[126,144], index: 3, kind: output, shape index: {}]
  %s4 = sld [smem:[#allocation0]]
  $region45: #{tpu_custom_call.1} parent=0
    _
  %s6 = ssub.s32 1, %s4
  %s7 = scalar_select 0, %s6, %s4
  loop: start=0, step=1, limit=6
  $region2: #{tpu_custom_call.1} parent=0 // loop_pre_header
    _
  $region3: #{tpu_custom_call.1} parent=0 // loop_header
    %s9 = sphi 0, %s13
    %p10 = scmp.ge.s32.totalorder %s9, 6
    %s19 = sphi 0, %s21
    %s22 = sphi 0, %s19
    %s23 = sphi 0, %s22
    %s39 = sphi 0, %s23
    %s43 = sphi 0, %s43
    %s45 = sphi 0, %s43
    %s46 = sphi 0, %s45
    %s60 = sphi 0, %s46
    %s64 = sphi 0, %s64
    %s66 = sphi 0, %s64
    %s67 = sphi 0, %s66
    %s81 = sphi 0, %s67
    %s87 = sphi 0, %s89
    %s90 = sphi 0, %s87
    %s91 = sphi 0, %s90
    %s107 = sphi 0, %s91
  $region4: #{tpu_custom_call.1} parent=0 // loop_header_branch
    %12 = sbr.rel (%p10) target = $region8
  $region5: #{tpu_custom_call.1} parent=0 // loop_body
    %s14 = ssub.s32 %s9, 1
    %s15 = ssub.s32 %s9, 2
    %s16 = sadd.s32 %s9, 1
    %s17 = ssub.s32 %s9, %s16
    %p18 = scmp.eq.s32.totalorder %s17, 0
    %s20 = sadd.s32 %s19, 1
    %s21 = scalar_select %p18, %s19, %s20
    %p24 = pneg %p18
    %p25 = scmp.eq.s32.totalorder %s9, 3
    %p26 = por %p24, %p25
    %p27 = scmp.ne.s32.totalorder %s19, %s22
    %p28 = scmp.eq.s32.totalorder %s9, 0
    %p29 = por %p27, %p28
    %p30 = scmp.ne.s32.totalorder %s19, %s22
    %p31 = scmp.eq.s32.totalorder %s14, 3
    %p32 = por %p30, %p31
    %p33 = scmp.ne.s32.totalorder %s22, %s23
    %p34 = scmp.eq.s32.totalorder %s14, 0
    %p35 = por %p33, %p34
    %p36 = scmp.ne.s32.totalorder %s22, %s23
    %p37 = scmp.eq.s32.totalorder %s15, 3
    %p38 = por %p36, %p37
    %p40 = scmp.ne.s32.totalorder %s23, %s39
    %p41 = scmp.eq.s32.totalorder %s15, 0
    %p42 = por %p40, %p41
    %s44 = sadd.s32 %s43, 1
    %p47 = scmp.eq.s32.totalorder %s9, 3
    %p48 = scmp.ne.s32.totalorder %s43, %s45
    %p49 = scmp.eq.s32.totalorder %s9, 0
    %p50 = por %p48, %p49
    %p51 = scmp.ne.s32.totalorder %s43, %s45
    %p52 = scmp.eq.s32.totalorder %s14, 3
    %p53 = por %p51, %p52
    %p54 = scmp.ne.s32.totalorder %s45, %s46
    %p55 = scmp.eq.s32.totalorder %s14, 0
    %p56 = por %p54, %p55
    %p57 = scmp.ne.s32.totalorder %s45, %s46
    %p58 = scmp.eq.s32.totalorder %s15, 3
    %p59 = por %p57, %p58
    %p61 = scmp.ne.s32.totalorder %s46, %s60
    %p62 = scmp.eq.s32.totalorder %s15, 0
    %p63 = por %p61, %p62
    %s65 = sadd.s32 %s64, 1
    %p68 = scmp.eq.s32.totalorder %s9, 3
    %p69 = scmp.ne.s32.totalorder %s64, %s66
    %p70 = scmp.eq.s32.totalorder %s9, 0
    %p71 = por %p69, %p70
    %p72 = scmp.ne.s32.totalorder %s64, %s66
    %p73 = scmp.eq.s32.totalorder %s14, 3
    %p74 = por %p72, %p73
    %p75 = scmp.ne.s32.totalorder %s66, %s67
    %p76 = scmp.eq.s32.totalorder %s14, 0
    %p77 = por %p75, %p76
    %p78 = scmp.ne.s32.totalorder %s66, %s67
    %p79 = scmp.eq.s32.totalorder %s15, 3
    %p80 = por %p78, %p79
    %p82 = scmp.ne.s32.totalorder %s67, %s81
    %p83 = scmp.eq.s32.totalorder %s15, 0
    %p84 = por %p82, %p83
    %s85 = ssub.s32 %s9, %s16
    %p86 = scmp.eq.s32.totalorder %s85, 0
    %s88 = sadd.s32 %s87, 1
    %s89 = scalar_select %p86, %s87, %s88
    %p92 = pneg %p86
    %p93 = scmp.eq.s32.totalorder %s9, 3
    %p94 = por %p92, %p93
    %p95 = scmp.ne.s32.totalorder %s87, %s90
    %p96 = scmp.eq.s32.totalorder %s9, 0
    %p97 = por %p95, %p96
    %p98 = scmp.ne.s32.totalorder %s87, %s90
    %p99 = scmp.eq.s32.totalorder %s14, 3
    %p100 = por %p98, %p99
    %p101 = scmp.ne.s32.totalorder %s90, %s91
    %p102 = scmp.eq.s32.totalorder %s14, 0
    %p103 = por %p101, %p102
    %p104 = scmp.ne.s32.totalorder %s90, %s91
    %p105 = scmp.eq.s32.totalorder %s15, 3
    %p106 = por %p104, %p105
    %p108 = scmp.ne.s32.totalorder %s91, %s107
    %p109 = scmp.eq.s32.totalorder %s15, 0
    %p110 = por %p108, %p109
    %p111 = scmp.le.s32.totalorder 1, %s9
    %p112 = scmp.lt.s32.totalorder %s9, 5
    %p113 = pnand %p111, %p112
    %p114 = pneg %p113
    // Predicated region
    $region9: #{tpu_custom_call.1} parent=5 // pred_check
      _
    $region10: #{tpu_custom_call.1} parent=5 // pred_check_branch
      %116 = sbr.rel (%p113) target = $region12
    $region11: #{tpu_custom_call.1} parent=5 // pred_region
      %s117 = ssub.s32 %s9, 1
      // Predicated region
      $region13: #{tpu_custom_call.1} parent=11 // pred_check
        %p118 = pneg %p56
      $region14: #{tpu_custom_call.1} parent=11 // pred_check_branch
        %120 = sbr.rel (%p118) target = $region16
      $region15: #{tpu_custom_call.1} parent=11 // pred_region
        _
      $region16: #{tpu_custom_call.1} parent=11 // pred_fallthru
        _
      // Predicated region
      $region17: #{tpu_custom_call.1} parent=11 // pred_check
        %p121 = pneg %p77
      $region18: #{tpu_custom_call.1} parent=11 // pred_check_branch
        %123 = sbr.rel (%p121) target = $region20
      $region19: #{tpu_custom_call.1} parent=11 // pred_region
        _
      $region20: #{tpu_custom_call.1} parent=11 // pred_fallthru
        _
    $region12: #{tpu_custom_call.1} parent=5 // pred_fallthru
      _
    %p124 = scmp.lt.s32.totalorder %s9, 4
    // Predicated region
    $region21: #{tpu_custom_call.1} parent=5 // pred_check
      %p125 = pneg %p124
    $region22: #{tpu_custom_call.1} parent=5 // pred_check_branch
      %127 = sbr.rel (%p125) target = $region24
    $region23: #{tpu_custom_call.1} parent=5 // pred_region
      // Predicated region
      $region25: #{tpu_custom_call.1} parent=23 // pred_check
        %p128 = pneg %p29
      $region26: #{tpu_custom_call.1} parent=23 // pred_check_branch
        %130 = sbr.rel (%p128) target = $region28
      $region27: #{tpu_custom_call.1} parent=23 // pred_region
        %s131 = smul.u32 4, %s9
        %p132 = scmp.lt.s32.totalorder %s131, 15
        %s133 = scalar_select %p132, %s131, 15
        %s134 = smul.addr %s133, 4
        %s135 = scalar_lea.vmem %s0, %s134
        %s136 = smul.u32 4, %s9
      $region28: #{tpu_custom_call.1} parent=23 // pred_fallthru
        _
    $region24: #{tpu_custom_call.1} parent=5 // pred_fallthru
      _
    %p137 = scmp.le.s32.totalorder 1, %s9
    %p138 = scmp.lt.s32.totalorder %s9, 5
    %p139 = pnand %p137, %p138
    %p140 = pneg %p139
    // Predicated region
    $region29: #{tpu_custom_call.1} parent=5 // pred_check
      _
    $region30: #{tpu_custom_call.1} parent=5 // pred_check_branch
      %142 = sbr.rel (%p139) target = $region32
    $region31: #{tpu_custom_call.1} parent=5 // pred_region
      %s143 = ssub.s32 %s9, 1
      %s144 = smul.u32 4, %s14
      %p145 = scmp.lt.s32.totalorder %s144, 15
      %s146 = scalar_select %p145, %s144, 15
      %s147 = smul.addr %s146, 4
      %s148 = scalar_lea.vmem %s0, %s147
      %p149 = pneg %p35
      %p150 = pneg %p32
      %p151 = pneg %p56
      %p152 = pneg %p53
      %p153 = pneg %p77
      %p154 = pneg %p74
      %p155 = pneg %p103
      %p156 = pneg %p100
      %s157 = smul.u32 4, %s14
      %p158 = scmp.lt.s32.totalorder %s157, 15
      %s159 = scalar_select %p158, %s157, 15
      %s160 = smul.addr %s159, 2
      %s161 = smul.addr %s160, 4
      %s162 = scalar_lea.vmem %s3, %s161
      %s163 = smul.u32 4, %s14
      %p164 = scmp.lt.s32.totalorder %s163, 15
      %s165 = scalar_select %p164, %s163, 15
      %s166 = smul.addr %s165, 4
      %s167 = scalar_lea.vmem %s0, %s166
      %s168 = smul.u32 4, %s14
      %s169 = smul.u32 4, %s14
      %p170 = scmp.lt.s32.totalorder %s169, 15
      %s171 = scalar_select %p170, %s169, 15
      %s172 = smul.addr %s171, 2
      %s173 = smul.addr %s172, 4
      %s174 = scalar_lea.vmem %s3, %s173
      %s175 = smul.u32 4, %s14
      %v177 = vld [vmem:[%s167] sm:$0xf]
      %v178 = vld [vmem:[%s167 + $0x4] sm:$0xf]
      %v179 = vld [vmem:[%s167 + $0x8] sm:$0xf]
      %v180 = vld [vmem:[%s167 + $0xc] sm:$0xf]
      %v181 = vld [vmem:[%s1] sm:$0xff]
      %v182 = vld [vmem:[%s1 + $0x8] sm:$0x33]
      %v183 = vld [vmem:[%s2] sm:$0x3]
      %v185 = vperm.slane %v183, 0
      %v186 = vperm.slane %v183, 1
      %v193 = vunpack.c.l.b16 %v177
      %v194 = vunpack.c.l.b16 %v178
      %v195 = vunpack.c.l.b16 %v179
      %v196 = vunpack.c.l.b16 %v180
      %v197 = vpack.c.b16 %v194, %v193
      %v198 = vpack.c.b16 %v196, %v195
      %v201 = vunpack.c.l.b16 %v181
      %v202 = vunpack.c.h.b16 %v181
      %v203 = vunpack.c.l.b16 %v182
      %v204 = vunpack.c.h.b16 %v182
      %v205 = vpack.c.b16 %v203, %v201
      %v206 = vpack.c.b16 %v204, %v202
      %vm207 = vcmask 97280
      %v209 = vsel %vm207, %v197, 0
      %v212 = vsel %vm207, %v198, 0
      %vm214 = vcmask 1045504
      %v216 = vsel %vm214, %v205, 0
      %v219 = vsel %vm214, %v206, 0
      %221 = vmatpush.bf16.msra.mxu0 0
      %222 = vmatpush.bf16.msra.mxu0 0
      %223 = vmatpush.bf16.msra.mxu0 0
      %224 = vmatpush.bf16.msra.mxu0 0
      %225 = vmatpush.bf16.msra.mxu0 0
      %226 = vmatpush.bf16.msra.mxu0 0
      %227 = vmatpush.bf16.msra.mxu0 0
      %228 = vmatpush.bf16.msra.mxu0 %v216
      %229 = vmatmul.bf16.gmra.mxu0 %v209
      %v230 = vpop.f32.mrf.mxu0
      %v231 = vadd.f32 %v185, %v230
      %v232 = vpop.f32.mrf.mxu0
      %v233 = vadd.f32 %v185, %v232
      %234 = vmatmul.bf16.gmra.mxu0 %v212
      %v235 = vpop.f32.mrf.mxu0
      %v236 = vadd.f32 %v185, %v235
      %v237 = vpop.f32.mrf.mxu0
      %v238 = vadd.f32 %v185, %v237
      %239 = vdwg.mxu0
      %240 = vmatpush.bf16.msra.mxu0 0
      %241 = vmatpush.bf16.msra.mxu0 0
      %242 = vmatpush.bf16.msra.mxu0 0
      %243 = vmatpush.bf16.msra.mxu0 0
      %244 = vmatpush.bf16.msra.mxu0 0
      %245 = vmatpush.bf16.msra.mxu0 0
      %246 = vmatpush.bf16.msra.mxu0 0
      %247 = vmatpush.bf16.msra.mxu0 %v219
      %248 = vmatmul.bf16.gmra.mxu0 %v209
      %v249 = vpop.f32.mrf.mxu0
      %v250 = vadd.f32 %v186, %v249
      %v251 = vpop.f32.mrf.mxu0
      %v252 = vadd.f32 %v186, %v251
      %253 = vmatmul.bf16.gmra.mxu0 %v212
      %v254 = vpop.f32.mrf.mxu0
      %v255 = vadd.f32 %v186, %v254
      %v256 = vpop.f32.mrf.mxu0
      %v257 = vadd.f32 %v186, %v256
      %258 = vdwg.mxu0
      %v259 = vpack.c.bf16 %v250, %v231
      %v260 = vpack.c.bf16 %v252, %v233
      %v261 = vpack.c.bf16 %v255, %v236
      %v262 = vpack.c.bf16 %v257, %v238
      %vm263 = vcmask 1043456
      %vm264 = vcmask 130052
      %vm265 = vmor %vm264, %vm263
      %266 = vst.msk [vmem:[%s174] sm:$0xff] %vm265, %v259
      %267 = vst.msk [vmem:[%s174 + $0x8] sm:$0xff] %vm265, %v260
      %268 = vst.msk [vmem:[%s174 + $0x10] sm:$0xff] %vm265, %v261
      %269 = vst.msk [vmem:[%s174 + $0x18] sm:$0xff] %vm265, %v262
      %s270 = smul.u32 4, %s14
      %p271 = scmp.lt.s32.totalorder %s270, 15
      %s272 = scalar_select %p271, %s270, 15
      %s273 = smul.addr %s272, 2
      %s274 = smul.addr %s273, 4
      %s275 = scalar_lea.vmem %s3, %s274
      // Predicated region
      $region33: #{tpu_custom_call.1} parent=31 // pred_check
        %p276 = pneg %p100
      $region34: #{tpu_custom_call.1} parent=31 // pred_check_branch
        %278 = sbr.rel (%p276) target = $region36
      $region35: #{tpu_custom_call.1} parent=31 // pred_region
        %s279 = smul.u32 4, %s14
      $region36: #{tpu_custom_call.1} parent=31 // pred_fallthru
        _
    $region32: #{tpu_custom_call.1} parent=5 // pred_fallthru
      _
    %p280 = scmp.le.s32.totalorder 2, %s9
    // Predicated region
    $region37: #{tpu_custom_call.1} parent=5 // pred_check
      %p281 = pneg %p280
    $region38: #{tpu_custom_call.1} parent=5 // pred_check_branch
      %283 = sbr.rel (%p281) target = $region40
    $region39: #{tpu_custom_call.1} parent=5 // pred_region
      %s284 = ssub.s32 %s9, 2
      // Predicated region
      $region41: #{tpu_custom_call.1} parent=39 // pred_check
        %p285 = pneg %p106
      $region42: #{tpu_custom_call.1} parent=39 // pred_check_branch
        %287 = sbr.rel (%p285) target = $region44
      $region43: #{tpu_custom_call.1} parent=39 // pred_region
        %s288 = smul.u32 4, %s15
        %p289 = scmp.lt.s32.totalorder %s288, 15
        %s290 = scalar_select %p289, %s288, 15
        %s291 = smul.addr %s290, 2
        %s292 = smul.addr %s291, 4
        %s293 = scalar_lea.vmem %s3, %s292
      $region44: #{tpu_custom_call.1} parent=39 // pred_fallthru
        _
    $region40: #{tpu_custom_call.1} parent=5 // pred_fallthru
      _
  $region6: #{tpu_custom_call.1} parent=0 // loop_footer
    %s13 = sadd.s32 1, %s9
  $region7: #{tpu_custom_call.1} parent=0 // loop_footer_branch
    %8 = sbr.rel target = $region3
  $region8: #{tpu_custom_call.1} parent=0 // loop_exit
    _

</llo_original>
